<compile_context>
chip_gen: v7x
topology: tpu7x:2x2x1
jax: 0.10.0
libtpu: 0.0.40
codegen_flags: <defaults>
</compile_context>

<pallas_src>
import functools

import jax
import jax.numpy as jnp
from jax.experimental import pallas as pl
from jax.experimental.pallas import tpu as pltpu


# ---------------------------------------------------------------------------
# Kernel 1: fully fused single-pass SELayer for a (Bt, C, HW) block
# ---------------------------------------------------------------------------
def _se_fused_kernel(x_ref, w1t_ref, w2_ref, o_ref, *, inv_hw, bt):
    """x_ref : (Bt, C, HW)  input block (channels on sublanes, pixels on lanes)
       w1t_ref: (C, Hp)     fc1 weight, transposed, hidden padded to Hp (mult of 8)
       w2_ref : (C, Hp)     fc2 weight, hidden padded to Hp
       o_ref : (Bt, C, HW)  output block
    """
    # Global average pool: reduce the lane (HW) axis with f32 accumulation.
    # Note: no full f32 copy of the tile is kept live across the FCs.
    pooled = jnp.sum(x_ref[...], axis=2, dtype=jnp.float32) * inv_hw      # (Bt, C)

    # fc1 (contract over C) + ReLU -- one batched dot for all Bt rows.
    h = jnp.dot(pooled, w1t_ref[...], preferred_element_type=jnp.float32)  # (Bt, Hp)
    h = jnp.maximum(h, 0.0)

    # fc2 in column-out orientation (contract Hp of both operands) so the gate
    # comes out as (C, Bt) with channels on sublanes -- the broadcast layout.
    g = jax.lax.dot_general(w2_ref[...], h, (((1,), (1,)), ((), ())),
                            preferred_element_type=jnp.float32)            # (C, Bt)
    g = 1.0 + jax.nn.sigmoid(g)                                            # (C, Bt)

    # out = x * (1 + y); re-read x_ref per batch element (static unroll).
    for b in range(bt):
        scale = g[:, b:b + 1].astype(o_ref.dtype)                          # (C, 1)
        o_ref[b] = x_ref[b] * scale


# ---------------------------------------------------------------------------
# Kernel 2a (two-pass path): pool over HW tiles, then compute (1 + gate)
# ---------------------------------------------------------------------------
def _se_pool_gate_kernel(x_ref, w1t_ref, w2_ref, gate_ref, acc_ref, *, inv_hw):
    """x_ref   : (1, C, Thw)  HW tile of one batch element
       w1t_ref : (C, Hp)
       w2_ref  : (C, Hp)
       gate_ref: (1, C, 1)    f32 output, resident across the HW-tile grid axis
       acc_ref : (1, C)       f32 running spatial sum (scratch)
    """
    t = pl.program_id(1)

    @pl.when(t == 0)
    def _():
        acc_ref[...] = jnp.zeros_like(acc_ref)

    acc_ref[...] += jnp.sum(x_ref[...], axis=2, dtype=jnp.float32)         # (1, C)

    @pl.when(t == pl.num_programs(1) - 1)
    def _():
        pooled = acc_ref[...] * inv_hw                                      # (1, C)
        h = jnp.dot(pooled, w1t_ref[...],
                    preferred_element_type=jnp.float32)                     # (1, Hp)
        h = jnp.maximum(h, 0.0)
        g = jax.lax.dot_general(w2_ref[...], h, (((1,), (1,)), ((), ())),
                                preferred_element_type=jnp.float32)         # (C, 1)
        gate_ref[0] = 1.0 + jax.nn.sigmoid(g)                               # (C, 1)


# ---------------------------------------------------------------------------
# Kernel 2b (two-pass path): scale x by the resident (1 + gate)
# ---------------------------------------------------------------------------
def _se_scale_kernel(x_ref, gate_ref, o_ref):
    """x_ref: (1, C, Thw); gate_ref: (1, C, 1) f32 (1 + y); o_ref: (1, C, Thw)."""
    o_ref[...] = x_ref[...] * gate_ref[...].astype(o_ref.dtype)


# ---------------------------------------------------------------------------
# Weight preparation (done once, outside the per-call path)
# ---------------------------------------------------------------------------
def prepare_se_weights(w1, w2):
    """w1: (hidden, C) fc1 weight; w2: (C, hidden) fc2 weight.
       Returns (w1t_p, w2_p), both (C, Hp) f32, hidden zero-padded to a multiple
       of 8 (exact numerical no-op through ReLU / fc2)."""
    hidden, _ = w1.shape
    hp = max(8, ((hidden + 7) // 8) * 8)
    w1p = jnp.pad(w1.astype(jnp.float32), ((0, hp - hidden), (0, 0)))   # (Hp, C)
    w2p = jnp.pad(w2.astype(jnp.float32), ((0, 0), (0, hp - hidden)))   # (C, Hp)
    return w1p.T, w2p                                                    # (C, Hp) x2


# ---------------------------------------------------------------------------
# pallas_call wrappers
# ---------------------------------------------------------------------------
def _single_pass(x3, w1t_p, w2_p, bt):
    B, C, HW = x3.shape
    hp = w1t_p.shape[1]
    block_bytes = bt * C * HW * x3.dtype.itemsize
    # in + out blocks are each double-buffered; leave headroom for weights/scratch.
    vmem_limit = int(min(64 * 1024 * 1024, max(32 * 1024 * 1024, 5 * block_bytes)))

    return pl.pallas_call(
        functools.partial(_se_fused_kernel, inv_hw=1.0 / HW, bt=bt),
        out_shape=jax.ShapeDtypeStruct((B, C, HW), x3.dtype),
        grid_spec=pltpu.PrefetchScalarGridSpec(
            num_scalar_prefetch=0,
            grid=(B // bt,),
            in_specs=[
                pl.BlockSpec((bt, C, HW), lambda i: (i, 0, 0)),
                pl.BlockSpec((C, hp), lambda i: (0, 0)),   # weights VMEM-resident
                pl.BlockSpec((C, hp), lambda i: (0, 0)),
            ],
            out_specs=pl.BlockSpec((bt, C, HW), lambda i: (i, 0, 0)),
        ),
        compiler_params=pltpu.CompilerParams(
            dimension_semantics=("parallel",),
            vmem_limit_bytes=vmem_limit),
    )(x3, w1t_p, w2_p)


def _two_pass(x3, w1t_p, w2_p, thw):
    B, C, HW = x3.shape
    hp = w1t_p.shape[1]
    n_t = HW // thw
    block_bytes = C * thw * x3.dtype.itemsize
    vmem_limit = int(min(64 * 1024 * 1024, max(32 * 1024 * 1024, 6 * block_bytes)))
    cparams = pltpu.CompilerParams(
        dimension_semantics=("parallel", "arbitrary"),
        vmem_limit_bytes=vmem_limit)

    # Pass 1: pooled sum accumulated across HW tiles; (1 + gate) emitted at the
    # last tile of each batch element (output block resident across the t axis).
    gate = pl.pallas_call(
        functools.partial(_se_pool_gate_kernel, inv_hw=1.0 / HW),
        out_shape=jax.ShapeDtypeStruct((B, C, 1), jnp.float32),
        grid_spec=pltpu.PrefetchScalarGridSpec(
            num_scalar_prefetch=0,
            grid=(B, n_t),
            in_specs=[
                pl.BlockSpec((1, C, thw), lambda b, t: (b, 0, t)),
                pl.BlockSpec((C, hp), lambda b, t: (0, 0)),
                pl.BlockSpec((C, hp), lambda b, t: (0, 0)),
            ],
            out_specs=pl.BlockSpec((1, C, 1), lambda b, t: (b, 0, 0)),
            scratch_shapes=[pltpu.VMEM((1, C), jnp.float32)],
        ),
        compiler_params=cparams,
    )(x3, w1t_p, w2_p)

    # Pass 2: re-stream x in the same 128-multiple HW tiles and scale.
    out = pl.pallas_call(
        _se_scale_kernel,
        out_shape=jax.ShapeDtypeStruct((B, C, HW), x3.dtype),
        grid_spec=pltpu.PrefetchScalarGridSpec(
            num_scalar_prefetch=0,
            grid=(B, n_t),
            in_specs=[
                pl.BlockSpec((1, C, thw), lambda b, t: (b, 0, t)),
                pl.BlockSpec((1, C, 1), lambda b, t: (b, 0, 0)),
            ],
            out_specs=pl.BlockSpec((1, C, thw), lambda b, t: (b, 0, t)),
        ),
        compiler_params=cparams,
    )(x3, gate)
    return out


def _pick_hw_tile(HW, C, itemsize, target):
    """Largest multiple of 128 that divides HW with C*thw*itemsize <= target."""
    best = 128
    t = 128
    while t <= HW:
        if HW % t == 0 and C * t * itemsize <= target:
            best = t
        t += 128
    return best


def se_layer_pallas(x_nchw, w1t_p, w2_p, *,
                    target_block_bytes=2 * 1024 * 1024,
                    max_single_block_bytes=4 * 1024 * 1024):
    """x_nchw: (B, C, H, W); w1t_p/w2_p from prepare_se_weights. Returns (B, C, H, W)."""
    B, C, H, W = x_nchw.shape
    HW = H * W
    itemsize = x_nchw.dtype.itemsize
    per_batch = C * HW * itemsize

    # Free reshape (collapse of trailing contiguous dims): NCHW -> (B, C, H*W).
    x3 = x_nchw.reshape(B, C, HW)

    if per_batch <= max_single_block_bytes or HW % 128 != 0:
        # Fused single-pass path. Pack as many batch elements per grid step as
        # fit the ~1-4 MiB block sweet spot (at least one).
        bt = 1
        for cand in range(1, B + 1):
            if B % cand == 0 and cand * per_batch <= max(per_batch, target_block_bytes):
                bt = cand
        out = _single_pass(x3, w1t_p, w2_p, bt)
    else:
        # Two-pass spatial-tile path (large images / v7x VMEM budget).
        thw = _pick_hw_tile(HW, C, itemsize, target_block_bytes)
        out = _two_pass(x3, w1t_p, w2_p, thw)

    return out.reshape(B, C, H, W)


# ---------------------------------------------------------------------------
# Pure-JAX reference (matches the PyTorch module exactly)
# ---------------------------------------------------------------------------
def se_layer_ref(x, w1, w2):
    y = jnp.mean(x, axis=(2, 3))                       # AdaptiveAvgPool2d(1) -> (B, C)
    y = jnp.maximum(y @ w1.T, 0.0)                     # Linear (no bias) + ReLU
    y = jax.nn.sigmoid(y @ w2.T)                       # Linear (no bias) + Sigmoid
    return x * (1.0 + y[:, :, None, None])             # x * (1 + y)


# ---------------------------------------------------------------------------
if __name__ == "__main__":
    key = jax.random.PRNGKey(0)
    k_x, k_w1, k_w2 = jax.random.split(key, 3)

    B, C, H, W = 2, 32, 16, 16
    reduction = 16
    hidden = C // reduction   # 2

    x = jax.random.normal(k_x, (B, C, H, W), jnp.float32)            # NCHW input
    w1 = jax.random.normal(k_w1, (hidden, C), jnp.float32) * 0.1     # fc1 weight
    w2 = jax.random.normal(k_w2, (C, hidden), jnp.float32) * 0.1     # fc2 weight

    w1t_p, w2_p = prepare_se_weights(w1, w2)    # padded / transposed once
    ref = jax.block_until_ready(se_layer_ref(x, w1, w2))

    # Default path: fused single-pass, whole problem in one grid step.
    out = jax.block_until_ready(se_layer_pallas(x, w1t_p, w2_p))
    assert out.shape == x.shape, (out.shape, x.shape)
    err = float(jnp.abs(out - ref).max())
    assert jnp.allclose(out, ref, atol=1e-5, rtol=1e-5), err

    # Also exercise the two-pass spatial-tile path (large-image / v7x route) by
    # forcing a tiny single-block budget; HW=256 splits into two 128-lane tiles.
    out2 = jax.block_until_ready(
        se_layer_pallas(x, w1t_p, w2_p,
                        target_block_bytes=16 * 1024,
                        max_single_block_bytes=16 * 1024))
    err2 = float(jnp.abs(out2 - ref).max())
    assert jnp.allclose(out2, ref, atol=1e-5, rtol=1e-5), err2

    print("KERNEL_OK")
</pallas_src>

<mosaic_0001>
module attributes {stable_mosaic.version = 11 : i64} {
  func.func @_se_fused_kernel(%arg0: i32, %arg1: memref<2x32x256xf32, #tpu.memory_space<vmem>>, %arg2: memref<32x8xf32, #tpu.memory_space<vmem>>, %arg3: memref<32x8xf32, #tpu.memory_space<vmem>>, %arg4: memref<2x32x256xf32, #tpu.memory_space<vmem>>) attributes {dimension_semantics = [#tpu.dimension_semantics<parallel>], iteration_bounds = array<i64: 1>, scalar_prefetch = 0 : i64, scratch_operands = 0 : i64, tpu.core_type = #tpu.core_type<tc>, window_params = [{transform_indices = @transform_0, window_bounds = array<i64: 2, 32, 256>}, {pipeline_mode = #tpu.pipeline_mode<synchronous>, transform_indices = @transform_1, window_bounds = array<i64: 32, 8>}, {pipeline_mode = #tpu.pipeline_mode<synchronous>, transform_indices = @transform_2, window_bounds = array<i64: 32, 8>}, {transform_indices = @transform_3, window_bounds = array<i64: 2, 32, 256>}]} {
    %c0 = arith.constant 0 : index
    %c0_0 = arith.constant 0 : index
    %c0_1 = arith.constant 0 : index
    %0 = vector.load %arg1[%c0, %c0_0, %c0_1] : memref<2x32x256xf32, #tpu.memory_space<vmem>>, vector<2x32x256xf32>
    %cst = arith.constant dense<0.000000e+00> : vector<2x32xf32>
    %1 = vector.multi_reduction <add>, %0, %cst [2] : vector<2x32x256xf32> to vector<2x32xf32>
    %cst_2 = arith.constant 3.906250e-03 : f32
    %2 = vector.broadcast %cst_2 : f32 to vector<2x32xf32>
    %3 = arith.mulf %1, %2 : vector<2x32xf32>
    %c0_3 = arith.constant 0 : index
    %c0_4 = arith.constant 0 : index
    %4 = vector.load %arg2[%c0_3, %c0_4] : memref<32x8xf32, #tpu.memory_space<vmem>>, vector<32x8xf32>
    %cst_5 = arith.constant dense<0.000000e+00> : vector<2x8xf32>
    %5 = tpu.matmul %3, %4, %cst_5 {dimension_numbers = #tpu.dot_dimension_numbers<[1], [0], [0], [1], [0, 0, 1, 1], [], []>} : vector<2x32xf32>, vector<32x8xf32>, vector<2x8xf32> -> vector<2x8xf32>
    %cst_6 = arith.constant 0.000000e+00 : f32
    %6 = vector.broadcast %cst_6 : f32 to vector<2x8xf32>
    %7 = arith.maximumf %5, %6 : vector<2x8xf32>
    %c0_7 = arith.constant 0 : index
    %c0_8 = arith.constant 0 : index
    %8 = vector.load %arg3[%c0_7, %c0_8] : memref<32x8xf32, #tpu.memory_space<vmem>>, vector<32x8xf32>
    %cst_9 = arith.constant dense<0.000000e+00> : vector<32x2xf32>
    %9 = tpu.matmul %8, %7, %cst_9 {dimension_numbers = #tpu.dot_dimension_numbers<[1], [1], [0], [0], [0, 0, 1, 0], [], []>} : vector<32x8xf32>, vector<2x8xf32>, vector<32x2xf32> -> vector<32x2xf32>
    %10 = arith.negf %9 : vector<32x2xf32>
    %11 = math.exp %10 : vector<32x2xf32>
    %cst_10 = arith.constant 1.000000e+00 : f32
    %12 = vector.broadcast %cst_10 : f32 to vector<32x2xf32>
    %13 = arith.addf %12, %11 : vector<32x2xf32>
    %14 = arith.divf %12, %13 : vector<32x2xf32>
    %cst_11 = arith.constant 1.000000e+00 : f32
    %15 = vector.broadcast %cst_11 : f32 to vector<32x2xf32>
    %16 = arith.addf %15, %14 : vector<32x2xf32>
    %17 = vector.extract_strided_slice %16 {offsets = [0, 0], sizes = [32, 1], strides = [1, 1]} : vector<32x2xf32> to vector<32x1xf32>
    %c0_12 = arith.constant 0 : index
    %c0_13 = arith.constant 0 : index
    %c0_14 = arith.constant 0 : index
    %18 = vector.load %arg1[%c0_12, %c0_13, %c0_14] : memref<2x32x256xf32, #tpu.memory_space<vmem>>, vector<1x32x256xf32>
    %19 = vector.shape_cast %18 : vector<1x32x256xf32> to vector<32x256xf32>
    %20 = vector.broadcast %17 : vector<32x1xf32> to vector<32x256xf32>
    %21 = arith.mulf %19, %20 : vector<32x256xf32>
    %c0_15 = arith.constant 0 : index
    %c0_16 = arith.constant 0 : index
    %c0_17 = arith.constant 0 : index
    %22 = vector.load %arg4[%c0_15, %c0_16, %c0_17] : memref<2x32x256xf32, #tpu.memory_space<vmem>>, vector<1x32x256xf32>
    %23 = vector.shape_cast %22 : vector<1x32x256xf32> to vector<32x256xf32>
    %24 = vector.shape_cast %21 : vector<32x256xf32> to vector<1x32x256xf32>
    tpu.vector_store %arg4[%c0_15, %c0_16, %c0_17], %24 {strides = array<i32>} : memref<2x32x256xf32, #tpu.memory_space<vmem>>, vector<1x32x256xf32>,
    %25 = vector.extract_strided_slice %16 {offsets = [0, 1], sizes = [32, 1], strides = [1, 1]} : vector<32x2xf32> to vector<32x1xf32>
    %c1 = arith.constant 1 : index
    %c0_18 = arith.constant 0 : index
    %c0_19 = arith.constant 0 : index
    %26 = vector.load %arg1[%c1, %c0_18, %c0_19] : memref<2x32x256xf32, #tpu.memory_space<vmem>>, vector<1x32x256xf32>
    %27 = vector.shape_cast %26 : vector<1x32x256xf32> to vector<32x256xf32>
    %28 = vector.broadcast %25 : vector<32x1xf32> to vector<32x256xf32>
    %29 = arith.mulf %27, %28 : vector<32x256xf32>
    %c1_20 = arith.constant 1 : index
    %c0_21 = arith.constant 0 : index
    %c0_22 = arith.constant 0 : index
    %30 = vector.load %arg4[%c1_20, %c0_21, %c0_22] : memref<2x32x256xf32, #tpu.memory_space<vmem>>, vector<1x32x256xf32>
    %31 = vector.shape_cast %30 : vector<1x32x256xf32> to vector<32x256xf32>
    %32 = vector.shape_cast %29 : vector<32x256xf32> to vector<1x32x256xf32>
    tpu.vector_store %arg4[%c1_20, %c0_21, %c0_22], %32 {strides = array<i32>} : memref<2x32x256xf32, #tpu.memory_space<vmem>>, vector<1x32x256xf32>,
    return
  }
  func.func @transform_0(%arg0: i32) -> (i32, i32, i32) {
    %c0_i32 = arith.constant 0 : i32
    %c0_i32_0 = arith.constant 0 : i32
    %c0_i32_1 = arith.constant 0 : i32
    return %arg0, %c0_i32, %c0_i32_0 : i32, i32, i32
  }
  func.func @transform_1(%arg0: i32) -> (i32, i32) {
    %c0_i32 = arith.constant 0 : i32
    %c0_i32_0 = arith.constant 0 : i32
    %c0_i32_1 = arith.constant 0 : i32
    return %c0_i32, %c0_i32_0 : i32, i32
  }
  func.func @transform_2(%arg0: i32) -> (i32, i32) {
    %c0_i32 = arith.constant 0 : i32
    %c0_i32_0 = arith.constant 0 : i32
    %c0_i32_1 = arith.constant 0 : i32
    return %c0_i32, %c0_i32_0 : i32, i32
  }
  func.func @transform_3(%arg0: i32) -> (i32, i32, i32) {
    %c0_i32 = arith.constant 0 : i32
    %c0_i32_0 = arith.constant 0 : i32
    %c0_i32_1 = arith.constant 0 : i32
    return %arg0, %c0_i32, %c0_i32_0 : i32, i32, i32
  }
}

</mosaic_0001>

<llo_original>
// kernel: tpu_custom_call.1
$region0: #{tpu_custom_call.1}
  #allocation0 [shape = 'u32[]', space=smem, size = 0x4, offset = 0x4, fixed_abs, tag = 'smem constant byte address 0x4 - core index']
  #allocation1 [shape = 'u32[144,128]{1,0:T(1,128)}', space=vmem, size = 0x12000, scoped, tag = 'internal scratch']
  %s0 = inlined_call_operand.hbm [shape: f32[2,32,256], index: 0, kind: input, shape index: {}]
  %s1 = inlined_call_operand.vmem [shape: f32[32,8], index: 1, kind: input, shape index: {}]
  %s2 = inlined_call_operand.vmem [shape: f32[32,8], index: 2, kind: input, shape index: {}]
  %s3 = inlined_call_operand.hbm [shape: f32[2,32,256], index: 3, kind: output, shape index: {}]
  %s4 = sld [smem:[#allocation0]]
  $region26: #{tpu_custom_call.1} parent=0
    _
  %s6 = ssub.s32 1, %s4
  %s7 = scalar_select 0, %s6, %s4
  $region1: #{tpu_custom_call.1} parent=0
    #allocation2 [shape = 'u8[65536]{0}', space=vmem, size = 0x10000, scoped, tag = 'input window, operand 0, single buffered']
    #allocation3 [shape = 's32[1]{0}', space=sflag, size = 0x4, scoped, tag = 'scoped memory for tpu_custom_call.1']
    #allocation4 [shape = 's32[1]{0}', space=sflag, size = 0x4, scoped, tag = 'scoped memory for tpu_custom_call.1']
    #allocation5 [shape = 'u8[65536]{0}', space=vmem, size = 0x10000, scoped, tag = 'output window, operand 0, single buffered']
    %8 = vsyncpa [#allocation3], 0
    %9 = vsyncpa [#allocation4], 0
    // Predicated region
    $region2: #{tpu_custom_call.1} parent=1 // pred_check
      _
    $region3: #{tpu_custom_call.1} parent=1 // pred_check_branch
      %11 = sbr.rel (0) target = $region5
    $region4: #{tpu_custom_call.1} parent=1 // pred_region
      %s13 = ssub.s32 2048, 2048
      %14 = vsyncadd [#allocation3], %s13
      %s15 = sshll.u32 [#allocation2], 4
      %s16 = int_to_ptr.vmem [resolvable:$true] %s15
      %21 = dma.hbm_to_vmem [thread:$0]  %s0, 2048, %s16, [#allocation3], 256, 256, 16
    $region5: #{tpu_custom_call.1} parent=1 // pred_fallthru
      _
    // Predicated region
    $region6: #{tpu_custom_call.1} parent=1 // pred_check
      _
    $region7: #{tpu_custom_call.1} parent=1 // pred_check_branch
      %23 = sbr.rel (0) target = $region9
    $region8: #{tpu_custom_call.1} parent=1 // pred_region
      _
    $region9: #{tpu_custom_call.1} parent=1 // pred_fallthru
      _
    // Predicated region
    $region10: #{tpu_custom_call.1} parent=1 // pred_check
      _
    $region11: #{tpu_custom_call.1} parent=1 // pred_check_branch
      %25 = sbr.rel (0) target = $region13
    $region12: #{tpu_custom_call.1} parent=1 // pred_region
      _
    $region13: #{tpu_custom_call.1} parent=1 // pred_fallthru
      _
    // Predicated region
    $region14: #{tpu_custom_call.1} parent=1 // pred_check
      _
    $region15: #{tpu_custom_call.1} parent=1 // pred_check_branch
      %27 = sbr.rel (0) target = $region17
    $region16: #{tpu_custom_call.1} parent=1 // pred_region
      %28 = dma.done [#allocation3], 2048
    $region17: #{tpu_custom_call.1} parent=1 // pred_fallthru
      _
    %v29 = vld [vmem:[#allocation2] sm:$0xff]
    %v30 = vld [vmem:[#allocation2 + $0x8] sm:$0xff]
    %v31 = vld [vmem:[#allocation2 + $0x10] sm:$0xff]
    %v32 = vld [vmem:[#allocation2 + $0x18] sm:$0xff]
    %v33 = vld [vmem:[#allocation2 + $0x20] sm:$0xff]
    %v34 = vld [vmem:[#allocation2 + $0x28] sm:$0xff]
    %v35 = vld [vmem:[#allocation2 + $0x30] sm:$0xff]
    %v36 = vld [vmem:[#allocation2 + $0x38] sm:$0xff]
    %v37 = vld [vmem:[#allocation2 + $0x40] sm:$0xff]
    %v38 = vld [vmem:[#allocation2 + $0x48] sm:$0xff]
    %v39 = vld [vmem:[#allocation2 + $0x50] sm:$0xff]
    %v40 = vld [vmem:[#allocation2 + $0x58] sm:$0xff]
    %v41 = vld [vmem:[#allocation2 + $0x60] sm:$0xff]
    %v42 = vld [vmem:[#allocation2 + $0x68] sm:$0xff]
    %v43 = vld [vmem:[#allocation2 + $0x70] sm:$0xff]
    %v44 = vld [vmem:[#allocation2 + $0x78] sm:$0xff]
    %v45 = vadd.f32 %v29, %v30
    %46 = vadd.xlane.f32.xlu0 %v45
    %v47 = vpop.xlane.xlu0 %46
    %v48 = vadd.f32 %v31, %v32
    %49 = vadd.xlane.f32.xlu0 %v48
    %v50 = vpop.xlane.xlu0 %49
    %v51 = vadd.f32 %v33, %v34
    %52 = vadd.xlane.f32.xlu0 %v51
    %v53 = vpop.xlane.xlu0 %52
    %v54 = vadd.f32 %v35, %v36
    %55 = vadd.xlane.f32.xlu0 %v54
    %v56 = vpop.xlane.xlu0 %55
    %v57 = vadd.f32 %v37, %v38
    %58 = vadd.xlane.f32.xlu0 %v57
    %v59 = vpop.xlane.xlu0 %58
    %v60 = vadd.f32 %v39, %v40
    %61 = vadd.xlane.f32.xlu0 %v60
    %v62 = vpop.xlane.xlu0 %61
    %v63 = vadd.f32 %v41, %v42
    %64 = vadd.xlane.f32.xlu0 %v63
    %v65 = vpop.xlane.xlu0 %64
    %v66 = vadd.f32 %v43, %v44
    %67 = vadd.xlane.f32.xlu0 %v66
    %v68 = vpop.xlane.xlu0 %67
    %v69 = vmul.f32 %v47, 0.00390625
    %v70 = vmul.f32 %v50, 0.00390625
    %v71 = vmul.f32 %v53, 0.00390625
    %v72 = vmul.f32 %v56, 0.00390625
    %v73 = vmul.f32 %v59, 0.00390625
    %v74 = vmul.f32 %v62, 0.00390625
    %v75 = vmul.f32 %v65, 0.00390625
    %v76 = vmul.f32 %v68, 0.00390625
    %v77 = vld [vmem:[%s1] sm:$0xff]
    %v78 = vld [vmem:[%s1 + $0x8] sm:$0xff]
    %v79 = vld [vmem:[%s1 + $0x10] sm:$0xff]
    %v80 = vld [vmem:[%s1 + $0x18] sm:$0xff]
    %v89 = vlaneseq
    %v90 = vand.u32 %v89, 127
    %v91 = vlaneseq
    %v92 = vshrl.u32 %v91, 7
    %v93 = vsub.s32 %v90, %v92
    %v94 = vrot.slane %v69, %v93
    %v95 = vadd.s32 %v90, 4294967288
    %v96 = vlaneseq
    %v97 = vshrl.u32 %v96, 7
    %v98 = vsub.s32 %v95, %v97
    %v99 = vrot.slane %v70, %v98
    %vm100 = vcmask 130112
    %v101 = vsel %vm100, %v99, %v94
    %v102 = vadd.s32 %v90, 4294967280
    %v103 = vlaneseq
    %v104 = vshrl.u32 %v103, 7
    %v105 = vsub.s32 %v102, %v104
    %v106 = vrot.slane %v71, %v105
    %vm107 = vcmask 195712
    %v108 = vsel %vm107, %v106, %v101
    %v109 = vadd.s32 %v90, 4294967272
    %v110 = vlaneseq
    %v111 = vshrl.u32 %v110, 7
    %v112 = vsub.s32 %v109, %v111
    %v113 = vrot.slane %v72, %v112
    %vm114 = vcmask 261312
    %v115 = vsel %vm114, %v113, %v108
    %v116 = vlaneseq
    %v117 = vshrl.u32 %v116, 7
    %v118 = vsub.s32 %v90, %v117
    %v119 = vrot.slane %v73, %v118
    %v120 = vlaneseq
    %v121 = vshrl.u32 %v120, 7
    %v122 = vsub.s32 %v95, %v121
    %v123 = vrot.slane %v74, %v122
    %v124 = vsel %vm100, %v123, %v119
    %v125 = vlaneseq
    %v126 = vshrl.u32 %v125, 7
    %v127 = vsub.s32 %v102, %v126
    %v128 = vrot.slane %v75, %v127
    %v129 = vsel %vm107, %v128, %v124
    %v130 = vlaneseq
    %v131 = vshrl.u32 %v130, 7
    %v132 = vsub.s32 %v109, %v131
    %v133 = vrot.slane %v76, %v132
    %v134 = vsel %vm114, %v133, %v129
    %vm135 = vcmask 1041409
    %v136 = vsel %vm135, %v134, %v115
    %vm137 = vcmask 261120
    %v138 = vsel %vm137, %v136, 0
    %140 = vmatprep.subr.mxu0 0.0
    %141 = vmatpush1.msra.mxu0 %v77
    %142 = vmatprep.subr.mxu0 0.0
    %143 = vmatpush1.msra.mxu0 %v78
    %144 = vmatprep.subr.mxu0 0.0
    %145 = vmatpush1.msra.mxu0 %v79
    %146 = vmatprep.subr.mxu0 0.0
    %147 = vmatpush1.msra.mxu0 %v80
    %148 = vmatprep.subr.mxu0 0.0
    %149 = vmatpush1.msra.mxu0 0.0
    %150 = vmatprep.subr.mxu0 0.0
    %151 = vmatpush1.msra.mxu0 0.0
    %152 = vmatprep.subr.mxu0 0.0
    %153 = vmatpush1.msra.mxu0 0.0
    %154 = vmatprep.subr.mxu0 0.0
    %155 = vmatpush1.msra.mxu0 0.0
    %156 = vmatprep.subr.mxu0 0.0
    %157 = vmatpush1.msra.mxu0 0.0
    %158 = vmatprep.subr.mxu0 0.0
    %159 = vmatpush1.msra.mxu0 0.0
    %160 = vmatprep.subr.mxu0 0.0
    %161 = vmatpush1.msra.mxu0 0.0
    %162 = vmatprep.subr.mxu0 0.0
    %163 = vmatpush1.msra.mxu0 0.0
    %164 = vmatprep.subr.mxu0 0.0
    %165 = vmatpush1.msra.mxu0 0.0
    %166 = vmatprep.subr.mxu0 0.0
    %167 = vmatpush1.msra.mxu0 0.0
    %168 = vmatprep.subr.mxu0 0.0
    %169 = vmatpush1.msra.mxu0 0.0
    %170 = vmatprep.subr.mxu0 0.0
    %171 = vmatpush1.msra.mxu0 0.0
    %172 = vmatprep.subr.mxu0 0.0
    %173 = vmatpush1.msra.mxu0 0.0
    %174 = vmatprep.subr.mxu0 0.0
    %175 = vmatpush1.msra.mxu0 0.0
    %176 = vmatprep.subr.mxu0 0.0
    %177 = vmatpush1.msra.mxu0 0.0
    %178 = vmatprep.subr.mxu0 0.0
    %179 = vmatpush1.msra.mxu0 0.0
    %180 = vmatprep.subr.mxu0 0.0
    %181 = vmatpush1.msra.mxu0 0.0
    %182 = vmatprep.subr.mxu0 0.0
    %183 = vmatpush1.msra.mxu0 0.0
    %184 = vmatprep.subr.mxu0 0.0
    %185 = vmatpush1.msra.mxu0 0.0
    %186 = vmatprep.subr.mxu0 0.0
    %187 = vmatpush1.msra.mxu0 0.0
    %188 = vmatprep.subr.mxu0 0.0
    %189 = vmatpush1.msra.mxu0 0.0
    %190 = vmatprep.subr.mxu0 0.0
    %191 = vmatpush1.msra.mxu0 0.0
    %192 = vmatprep.subr.mxu0 0.0
    %193 = vmatpush1.msra.mxu0 0.0
    %194 = vmatprep.subr.mxu0 0.0
    %195 = vmatpush1.msra.mxu0 0.0
    %196 = vmatprep.subr.mxu0 0.0
    %197 = vmatpush1.msra.mxu0 0.0
    %198 = vmatprep.subr.mxu0 0.0
    %199 = vmatpush1.msra.mxu0 0.0
    %200 = vmatprep.subr.mxu0 0.0
    %201 = vmatpush1.msra.mxu0 0.0
    %202 = vmatprep.subr.mxu0 0.0
    %203 = vmatpush1.msra.mxu0 0.0
    %204 = vmatprep.mubr.f32.mxu0 0.0
    %205 = vmatmul.mubr.f32.gmra.mrb[0].mxu0 %v138
    %v206 = vpop.f32.mrb[0].mxu0
    %v207 = vadd.f32 0.0, %v206
    %v208 = vpop.f32.mrb[0].mxu0
    %209 = vdwg.mxu0
    %v210 = vmax.f32 %v207, 0.0
    %v211 = vld [vmem:[%s2] sm:$0xff]
    %v212 = vld [vmem:[%s2 + $0x8] sm:$0xff]
    %v213 = vld [vmem:[%s2 + $0x10] sm:$0xff]
    %v214 = vld [vmem:[%s2 + $0x18] sm:$0xff]
    %vm215 = vcmask 64512
    %v217 = vsel %vm215, %v211, 0
    %v220 = vsel %vm215, %v212, 0
    %v223 = vsel %vm215, %v213, 0
    %v226 = vsel %vm215, %v214, 0
    %v229 = vsel %vm215, %v210, 0
    %231 = vmatprep.subr.mxu0 0.0
    %232 = vmatpush1.xpose.msra.mxu0 %v229
    %233 = vmatprep.subr.mxu0 0.0
    %234 = vmatpush1.xpose.msra.mxu0 0.0
    %235 = vmatprep.subr.mxu0 0.0
    %236 = vmatpush1.xpose.msra.mxu0 0.0
    %237 = vmatprep.subr.mxu0 0.0
    %238 = vmatpush1.xpose.msra.mxu0 0.0
    %239 = vmatprep.subr.mxu0 0.0
    %240 = vmatpush1.xpose.msra.mxu0 0.0
    %241 = vmatprep.subr.mxu0 0.0
    %242 = vmatpush1.xpose.msra.mxu0 0.0
    %243 = vmatprep.subr.mxu0 0.0
    %244 = vmatpush1.xpose.msra.mxu0 0.0
    %245 = vmatprep.subr.mxu0 0.0
    %246 = vmatpush1.xpose.msra.mxu0 0.0
    %247 = vmatprep.subr.mxu0 0.0
    %248 = vmatpush1.xpose.msra.mxu0 0.0
    %249 = vmatprep.subr.mxu0 0.0
    %250 = vmatpush1.xpose.msra.mxu0 0.0
    %251 = vmatprep.subr.mxu0 0.0
    %252 = vmatpush1.xpose.msra.mxu0 0.0
    %253 = vmatprep.subr.mxu0 0.0
    %254 = vmatpush1.xpose.msra.mxu0 0.0
    %255 = vmatprep.subr.mxu0 0.0
    %256 = vmatpush1.xpose.msra.mxu0 0.0
    %257 = vmatprep.subr.mxu0 0.0
    %258 = vmatpush1.xpose.msra.mxu0 0.0
    %259 = vmatprep.subr.mxu0 0.0
    %260 = vmatpush1.xpose.msra.mxu0 0.0
    %261 = vmatprep.subr.mxu0 0.0
    %262 = vmatpush1.xpose.msra.mxu0 0.0
    %263 = vmatprep.subr.mxu0 0.0
    %264 = vmatpush1.xpose.msra.mxu0 0.0
    %265 = vmatprep.subr.mxu0 0.0
    %266 = vmatpush1.xpose.msra.mxu0 0.0
    %267 = vmatprep.subr.mxu0 0.0
    %268 = vmatpush1.xpose.msra.mxu0 0.0
    %269 = vmatprep.subr.mxu0 0.0
    %270 = vmatpush1.xpose.msra.mxu0 0.0
    %271 = vmatprep.subr.mxu0 0.0
    %272 = vmatpush1.xpose.msra.mxu0 0.0
    %273 = vmatprep.subr.mxu0 0.0
    %274 = vmatpush1.xpose.msra.mxu0 0.0
    %275 = vmatprep.subr.mxu0 0.0
    %276 = vmatpush1.xpose.msra.mxu0 0.0
    %277 = vmatprep.subr.mxu0 0.0
    %278 = vmatpush1.xpose.msra.mxu0 0.0
    %279 = vmatprep.subr.mxu0 0.0
    %280 = vmatpush1.xpose.msra.mxu0 0.0
    %281 = vmatprep.subr.mxu0 0.0
    %282 = vmatpush1.xpose.msra.mxu0 0.0
    %283 = vmatprep.subr.mxu0 0.0
    %284 = vmatpush1.xpose.msra.mxu0 0.0
    %285 = vmatprep.subr.mxu0 0.0
    %286 = vmatpush1.xpose.msra.mxu0 0.0
    %287 = vmatprep.subr.mxu0 0.0
    %288 = vmatpush1.xpose.msra.mxu0 0.0
    %289 = vmatprep.subr.mxu0 0.0
    %290 = vmatpush1.xpose.msra.mxu0 0.0
    %291 = vmatprep.subr.mxu0 0.0
    %292 = vmatpush1.xpose.msra.mxu0 0.0
    %293 = vmatprep.subr.mxu0 0.0
    %294 = vmatpush1.xpose.msra.mxu0 0.0
    %295 = vmatprep.mubr.f32.mxu0 0.0
    %296 = vmatmul.mubr.f32.gmra.mrb[0].mxu0 %v217
    %v297 = vpop.f32.mrb[0].mxu0
    %v298 = vadd.f32 0.0, %v297
    %v299 = vpop.f32.mrb[0].mxu0
    %300 = vmatprep.mubr.f32.mxu0 0.0
    %301 = vmatmul.mubr.f32.gmra.mrb[0].mxu0 %v220
    %v302 = vpop.f32.mrb[0].mxu0
    %v303 = vadd.f32 0.0, %v302
    %v304 = vpop.f32.mrb[0].mxu0
    %305 = vmatprep.mubr.f32.mxu0 0.0
    %306 = vmatmul.mubr.f32.gmra.mrb[0].mxu0 %v223
    %v307 = vpop.f32.mrb[0].mxu0
    %v308 = vadd.f32 0.0, %v307
    %v309 = vpop.f32.mrb[0].mxu0
    %310 = vmatprep.mubr.f32.mxu0 0.0
    %311 = vmatmul.mubr.f32.gmra.mrb[0].mxu0 %v226
    %v312 = vpop.f32.mrb[0].mxu0
    %v313 = vadd.f32 0.0, %v312
    %v314 = vpop.f32.mrb[0].mxu0
    %315 = vdwg.mxu0
    %v316 = vxor.u32 %v298, 2147483648
    %v317 = vxor.u32 %v303, 2147483648
    %v318 = vxor.u32 %v308, 2147483648
    %v319 = vxor.u32 %v313, 2147483648
    %v320 = vmul.f32 %v316, 1.442695
    %v321 = vpow.pop %v320
    %v322 = vmul.f32 %v317, 1.442695
    %v323 = vpow.pop %v322
    %v324 = vmul.f32 %v318, 1.442695
    %v325 = vpow.pop %v324
    %v326 = vmul.f32 %v319, 1.442695
    %v327 = vpow.pop %v326
    %v328 = vadd.f32 %v321, 1.0
    %v329 = vadd.f32 %v323, 1.0
    %v330 = vadd.f32 %v325, 1.0
    %v331 = vadd.f32 %v327, 1.0
    %v332 = vrcp.pop %v328
    %v333 = vmul.f32 1.0, %v332
    %v334 = vrcp.pop %v329
    %v335 = vmul.f32 1.0, %v334
    %v336 = vrcp.pop %v330
    %v337 = vmul.f32 1.0, %v336
    %v338 = vrcp.pop %v331
    %v339 = vmul.f32 1.0, %v338
    %v340 = vadd.f32 %v333, 1.0
    %v341 = vadd.f32 %v335, 1.0
    %v342 = vadd.f32 %v337, 1.0
    %v343 = vadd.f32 %v339, 1.0
    %v344 = vld [vmem:[#allocation2] sm:$0xff]
    %v345 = vld [vmem:[#allocation2 + $0x8] sm:$0xff]
    %v346 = vld [vmem:[#allocation2 + $0x10] sm:$0xff]
    %v347 = vld [vmem:[#allocation2 + $0x18] sm:$0xff]
    %v348 = vld [vmem:[#allocation2 + $0x20] sm:$0xff]
    %v349 = vld [vmem:[#allocation2 + $0x28] sm:$0xff]
    %v350 = vld [vmem:[#allocation2 + $0x30] sm:$0xff]
    %v351 = vld [vmem:[#allocation2 + $0x38] sm:$0xff]
    %353 = vset.pattern.permute.xlu0 0
    %354 = vperm.xlu0 %353, %v340
    %v355 = vpop.permute.xlu0 %354
    %358 = vset.pattern.permute.xlu0 0
    %359 = vperm.xlu0 %358, %v341
    %v360 = vpop.permute.xlu0 %359
    %363 = vset.pattern.permute.xlu0 0
    %364 = vperm.xlu0 %363, %v342
    %v365 = vpop.permute.xlu0 %364
    %368 = vset.pattern.permute.xlu0 0
    %369 = vperm.xlu0 %368, %v343
    %v370 = vpop.permute.xlu0 %369
    %v372 = vmul.f32 %v344, %v355
    %v373 = vmul.f32 %v345, %v355
    %v374 = vmul.f32 %v346, %v360
    %v375 = vmul.f32 %v347, %v360
    %v376 = vmul.f32 %v348, %v365
    %v377 = vmul.f32 %v349, %v365
    %v378 = vmul.f32 %v350, %v370
    %v379 = vmul.f32 %v351, %v370
    %380 = vst [vmem:[#allocation5] sm:$0xff] %v372
    %381 = vst [vmem:[#allocation5 + $0x8] sm:$0xff] %v373
    %382 = vst [vmem:[#allocation5 + $0x10] sm:$0xff] %v374
    %383 = vst [vmem:[#allocation5 + $0x18] sm:$0xff] %v375
    %384 = vst [vmem:[#allocation5 + $0x20] sm:$0xff] %v376
    %385 = vst [vmem:[#allocation5 + $0x28] sm:$0xff] %v377
    %386 = vst [vmem:[#allocation5 + $0x30] sm:$0xff] %v378
    %387 = vst [vmem:[#allocation5 + $0x38] sm:$0xff] %v379
    %s388 = scalar_lea.vmem [#allocation2], 64
    %v389 = vld [vmem:[%s388] sm:$0xff]
    %v390 = vld [vmem:[%s388 + $0x8] sm:$0xff]
    %v391 = vld [vmem:[%s388 + $0x10] sm:$0xff]
    %v392 = vld [vmem:[%s388 + $0x18] sm:$0xff]
    %v393 = vld [vmem:[%s388 + $0x20] sm:$0xff]
    %v394 = vld [vmem:[%s388 + $0x28] sm:$0xff]
    %v395 = vld [vmem:[%s388 + $0x30] sm:$0xff]
    %v396 = vld [vmem:[%s388 + $0x38] sm:$0xff]
    %397 = vset.pattern.permute.xlu0 1
    %398 = vperm.xlu0 %397, %v340
    %v399 = vpop.permute.xlu0 %398
    %401 = vset.pattern.permute.xlu0 1
    %402 = vperm.xlu0 %401, %v341
    %v403 = vpop.permute.xlu0 %402
    %405 = vset.pattern.permute.xlu0 1
    %406 = vperm.xlu0 %405, %v342
    %v407 = vpop.permute.xlu0 %406
    %409 = vset.pattern.permute.xlu0 1
    %410 = vperm.xlu0 %409, %v343
    %v411 = vpop.permute.xlu0 %410
    %v413 = vmul.f32 %v389, %v399
    %v414 = vmul.f32 %v390, %v399
    %v415 = vmul.f32 %v391, %v403
    %v416 = vmul.f32 %v392, %v403
    %v417 = vmul.f32 %v393, %v407
    %v418 = vmul.f32 %v394, %v407
    %v419 = vmul.f32 %v395, %v411
    %v420 = vmul.f32 %v396, %v411
    %s421 = scalar_lea.vmem [#allocation5], 64
    %422 = vst [vmem:[%s421] sm:$0xff] %v413
    %423 = vst [vmem:[%s421 + $0x8] sm:$0xff] %v414
    %424 = vst [vmem:[%s421 + $0x10] sm:$0xff] %v415
    %425 = vst [vmem:[%s421 + $0x18] sm:$0xff] %v416
    %426 = vst [vmem:[%s421 + $0x20] sm:$0xff] %v417
    %427 = vst [vmem:[%s421 + $0x28] sm:$0xff] %v418
    %428 = vst [vmem:[%s421 + $0x30] sm:$0xff] %v419
    %429 = vst [vmem:[%s421 + $0x38] sm:$0xff] %v420
    // Predicated region
    $region18: #{tpu_custom_call.1} parent=1 // pred_check
      _
    $region19: #{tpu_custom_call.1} parent=1 // pred_check_branch
      %431 = sbr.rel (0) target = $region21
    $region20: #{tpu_custom_call.1} parent=1 // pred_region
      %s433 = ssub.s32 2048, 2048
      %434 = vsyncadd [#allocation4], %s433
      %s435 = sshll.u32 [#allocation5], 4
      %s436 = int_to_ptr.vmem [resolvable:$true] %s435
      %441 = dma.vmem_to_hbm [thread:$0]  %s436, 2048, %s3, [#allocation4], 256, 256, 16
    $region21: #{tpu_custom_call.1} parent=1 // pred_fallthru
      _
    // Predicated region
    $region22: #{tpu_custom_call.1} parent=1 // pred_check
      _
    $region23: #{tpu_custom_call.1} parent=1 // pred_check_branch
      %443 = sbr.rel (0) target = $region25
    $region24: #{tpu_custom_call.1} parent=1 // pred_region
      %444 = dma.done [#allocation4], 2048
    $region25: #{tpu_custom_call.1} parent=1 // pred_fallthru
      _
    %445 = vsyncpa [#allocation3], 1
    %446 = vsyncpa [#allocation4], 1

</llo_original>
